<compile_context>
chip_gen: v5e
topology: v5e:2x2
jax: 0.10.0
libtpu: 0.0.40
codegen_flags: <defaults>
</compile_context>

<pallas_src>
import jax
import jax.numpy as jnp
from jax.experimental import pallas as pl
from jax.experimental.pallas import tpu as pltpu

BN_EPS = 1e-5
_HI = jax.lax.Precision.HIGHEST


def deepfm_kernel(xT_ref, wcatT_ref, b1_ref, w2T_ref, b2_ref, w3_ref, b3_ref,
                  out_ref):
    """One batch tile.  Batch lies along lanes everywhere.

    xT_ref    : (F*E, TILE_B)  input tile (x flattened + transposed)
    wcatT_ref : (D1+E, F*E)    [W1_folded^T ; S^T]  (S = field-sum selector)
    b1_ref    : (D1, 1)        folded bias 1
    w2T_ref   : (D2, D1)       W2_folded^T
    b2_ref    : (D2, 1)        folded bias 2
    w3_ref    : (D2, 1)        output-layer weight (as a column)
    b3_ref    : (1, 1)         output-layer bias
    out_ref   : (1, TILE_B)    sigmoid(fm + dnn), lane-dense
    """
    xT = xT_ref[...]                                          # (FE, TB)
    d1 = b1_ref.shape[0]

    # Single MXU pass: rows [0:d1) = h1 pre-activation, rows [d1:) = field sums.
    hcat = jnp.dot(wcatT_ref[...], xT,
                   preferred_element_type=jnp.float32, precision=_HI)
    h1 = jnp.maximum(hcat[:d1, :] + b1_ref[...], 0.0)         # (D1, TB)
    sT = hcat[d1:, :]                                         # (E,  TB)
    # TODO(synk): nn.Dropout(p=0.2) is train-time only; identity at inference.

    # ---- FM branch: 0.5 * ((sum_f x)^2 - sum_f x^2), reduced over embed dim.
    square_of_sum = jnp.sum(sT * sT, axis=0, keepdims=True)   # (1, TB)
    sum_of_square = jnp.sum(xT * xT, axis=0, keepdims=True)   # (1, TB)
    fm = 0.5 * (square_of_sum - sum_of_square)

    # ---- DNN layer 2: Linear + (folded) BN + ReLU.
    h2 = jnp.dot(w2T_ref[...], h1,
                 preferred_element_type=jnp.float32, precision=_HI)
    h2 = jnp.maximum(h2 + b2_ref[...], 0.0)                   # (D2, TB)

    # ---- Output layer Linear(D2, 1): VPU multiply + sublane reduce.
    dnn = jnp.sum(h2 * w3_ref[...], axis=0, keepdims=True) + b3_ref[...]

    out_ref[...] = jax.nn.sigmoid(fm + dnn)                   # (1, TB)


def init_params(key, input_dim, hidden=(32, 16)):
    """Linear weights ~ N(0, 1/sqrt(fan_in)); BatchNorm uses PyTorch defaults."""
    d1, d2 = hidden
    k1, k2, k3 = jax.random.split(key, 3)
    f32 = jnp.float32
    return dict(
        w1=jax.random.normal(k1, (input_dim, d1), f32) / jnp.sqrt(input_dim),
        b1=jnp.zeros((1, d1), f32),
        g1=jnp.ones((1, d1), f32), bt1=jnp.zeros((1, d1), f32),
        rm1=jnp.zeros((1, d1), f32), rv1=jnp.ones((1, d1), f32),
        w2=jax.random.normal(k2, (d1, d2), f32) / jnp.sqrt(d1),
        b2=jnp.zeros((1, d2), f32),
        g2=jnp.ones((1, d2), f32), bt2=jnp.zeros((1, d2), f32),
        rm2=jnp.zeros((1, d2), f32), rv2=jnp.ones((1, d2), f32),
        w3=jax.random.normal(k3, (d2, 1), f32) / jnp.sqrt(d2),
        b3=jnp.zeros((1, 1), f32),
    )


def deepfm_forward(x, params, *, tile_b=2048):
    """Fused DeepFM forward.  x: (B, F, E) float32 -> (B, 1) float32.

    tile_b: batch tile (rounded to a multiple of 128).  Per-step VMEM is
    ~2 * F*E * tile_b * 4 B for the double-buffered input tile, so even
    tile_b=8192 is ~2 MiB -- well inside v7x's 32 MiB default scoped VMEM.
    """
    b, f, e = x.shape
    fe = f * e
    f32 = jnp.float32

    # --- Fold eval-mode BatchNorm into the Linear layers (wrapper-side).
    s1 = params["g1"] * jax.lax.rsqrt(params["rv1"] + BN_EPS)      # (1, d1)
    w1f = params["w1"] * s1                                        # (fe, d1)
    b1f = (params["b1"] - params["rm1"]) * s1 + params["bt1"]      # (1, d1)
    s2 = params["g2"] * jax.lax.rsqrt(params["rv2"] + BN_EPS)
    w2f = params["w2"] * s2                                        # (d1, d2)
    b2f = (params["b2"] - params["rm2"]) * s2 + params["bt2"]      # (1, d2)
    d1, d2 = w1f.shape[1], w2f.shape[1]

    # --- FM field-sum selector: (xT^T @ S)[:, j] = sum_f x[:, f, j].
    S = jnp.tile(jnp.eye(e, dtype=f32), (f, 1))                    # (fe, e)

    # Transposed weights (batch lies along lanes inside the kernel); the
    # selector is concatenated onto W1 so one MXU pass yields [h1_pre ; sums].
    wcatT = jnp.concatenate([w1f.T, S.T], axis=0)                  # (d1+e, fe)
    w2T = w2f.T                                                    # (d2, d1)
    b1c = b1f.reshape(d1, 1)
    b2c = b2f.reshape(d2, 1)
    w3c = params["w3"].reshape(d2, 1)
    b3c = params["b3"].reshape(1, 1)

    # --- Lane-dense input: flatten (free for contiguous x), transpose so the
    # batch dim maps to lanes, and pad batch to a multiple of the tile.
    tile_b = max(128, (tile_b // 128) * 128)
    tile_b = min(tile_b, pl.cdiv(b, 128) * 128)
    b_pad = pl.cdiv(b, tile_b) * tile_b
    xT = x.reshape(b, fe).T                                        # (fe, b)
    if b_pad != b:
        xT = jnp.pad(xT, ((0, 0), (0, b_pad - b)))

    const = lambda i: (0, 0)   # weights: same block each step -> stay resident
    out = pl.pallas_call(
        deepfm_kernel,
        out_shape=jax.ShapeDtypeStruct((1, b_pad), f32),
        grid=(b_pad // tile_b,),
        in_specs=[
            pl.BlockSpec((fe, tile_b), lambda i: (0, i)),          # streamed x
            pl.BlockSpec((d1 + e, fe), const),
            pl.BlockSpec((d1, 1), const),
            pl.BlockSpec((d2, d1), const),
            pl.BlockSpec((d2, 1), const),
            pl.BlockSpec((d2, 1), const),
            pl.BlockSpec((1, 1), const),
        ],
        out_specs=pl.BlockSpec((1, tile_b), lambda i: (0, i)),
        compiler_params=pltpu.CompilerParams(
            dimension_semantics=("parallel",)),                    # 2 TCs on v7x
    )(xT, wcatT, b1c, w2T, b2c, w3c, b3c)

    return out[0, :b].reshape(b, 1)


def deepfm_reference(x, params):
    """Plain-JAX reference for sanity checking."""
    b, f, e = x.shape
    s = jnp.sum(x, axis=1)
    fm = 0.5 * jnp.sum(s * s - jnp.sum(x * x, axis=1), axis=1, keepdims=True)
    h = jnp.dot(x.reshape(b, f * e), params["w1"], precision=_HI) + params["b1"]
    h = (h - params["rm1"]) / jnp.sqrt(params["rv1"] + BN_EPS) * params["g1"] + params["bt1"]
    h = jnp.maximum(h, 0.0)
    h = jnp.dot(h, params["w2"], precision=_HI) + params["b2"]
    h = (h - params["rm2"]) / jnp.sqrt(params["rv2"] + BN_EPS) * params["g2"] + params["bt2"]
    h = jnp.maximum(h, 0.0)
    dnn = jnp.dot(h, params["w3"], precision=_HI) + params["b3"]
    return jax.nn.sigmoid(fm + dnn)


if __name__ == "__main__":
    key = jax.random.PRNGKey(0)
    kx, kp = jax.random.split(key)

    B, F, E = 256, 4, 8                 # batch, num_fields, embedding_dim
    x = jax.random.normal(kx, (B, F, E), jnp.float32)
    params = init_params(kp, input_dim=F * E, hidden=(32, 16))

    out = deepfm_forward(x, params, tile_b=128)   # 2 batch tiles -> exercises the grid
    out = jax.block_until_ready(out)

    ref = deepfm_reference(x, params)
    assert out.shape == (B, 1)
    assert jnp.allclose(out, ref, atol=1e-4, rtol=1e-4), (
        "mismatch vs reference, max abs err = "
        f"{jnp.max(jnp.abs(out - ref))}")

    print("KERNEL_OK")
</pallas_src>

<mosaic_0001>
module attributes {stable_mosaic.version = 11 : i64} {
  func.func @deepfm_kernel(%arg0: i32, %arg1: memref<32x128xf32, #tpu.memory_space<vmem>>, %arg2: memref<40x32xf32, #tpu.memory_space<vmem>>, %arg3: memref<32x1xf32, #tpu.memory_space<vmem>>, %arg4: memref<16x32xf32, #tpu.memory_space<vmem>>, %arg5: memref<16x1xf32, #tpu.memory_space<vmem>>, %arg6: memref<16x1xf32, #tpu.memory_space<vmem>>, %arg7: memref<1x1xf32, #tpu.memory_space<vmem>>, %arg8: memref<1x128xf32, #tpu.memory_space<vmem>>) attributes {dimension_semantics = [#tpu.dimension_semantics<parallel>], iteration_bounds = array<i64: 2>, scalar_prefetch = 0 : i64, scratch_operands = 0 : i64, tpu.core_type = #tpu.core_type<tc>, window_params = [{transform_indices = @transform_0, window_bounds = array<i64: 32, 128>}, {pipeline_mode = #tpu.pipeline_mode<synchronous>, transform_indices = @transform_1, window_bounds = array<i64: 40, 32>}, {pipeline_mode = #tpu.pipeline_mode<synchronous>, transform_indices = @transform_2, window_bounds = array<i64: 32, 1>}, {pipeline_mode = #tpu.pipeline_mode<synchronous>, transform_indices = @transform_3, window_bounds = array<i64: 16, 32>}, {pipeline_mode = #tpu.pipeline_mode<synchronous>, transform_indices = @transform_4, window_bounds = array<i64: 16, 1>}, {pipeline_mode = #tpu.pipeline_mode<synchronous>, transform_indices = @transform_5, window_bounds = array<i64: 16, 1>}, {pipeline_mode = #tpu.pipeline_mode<synchronous>, transform_indices = @transform_6, window_bounds = array<i64: 1, 1>}, {transform_indices = @transform_7, window_bounds = array<i64: 1, 128>}]} {
    %c0 = arith.constant 0 : index
    %c0_0 = arith.constant 0 : index
    %0 = vector.load %arg1[%c0, %c0_0] : memref<32x128xf32, #tpu.memory_space<vmem>>, vector<32x128xf32>
    %c0_1 = arith.constant 0 : index
    %c0_2 = arith.constant 0 : index
    %1 = vector.load %arg2[%c0_1, %c0_2] : memref<40x32xf32, #tpu.memory_space<vmem>>, vector<40x32xf32>
    %cst = arith.constant dense<0.000000e+00> : vector<40x128xf32>
    %2 = tpu.matmul %1, %0, %cst {dimension_numbers = #tpu.dot_dimension_numbers<[1], [0], [0], [1], [0, 0, 1, 1], [], []>, precision = #tpu.contract_precision<fp32>} : vector<40x32xf32>, vector<32x128xf32>, vector<40x128xf32> -> vector<40x128xf32>
    %3 = vector.extract_strided_slice %2 {offsets = [0, 0], sizes = [32, 128], strides = [1, 1]} : vector<40x128xf32> to vector<32x128xf32>
    %c0_3 = arith.constant 0 : index
    %c0_4 = arith.constant 0 : index
    %4 = vector.load %arg3[%c0_3, %c0_4] : memref<32x1xf32, #tpu.memory_space<vmem>>, vector<32x1xf32>
    %5 = vector.broadcast %4 : vector<32x1xf32> to vector<32x128xf32>
    %6 = arith.addf %3, %5 : vector<32x128xf32>
    %cst_5 = arith.constant 0.000000e+00 : f32
    %7 = vector.broadcast %cst_5 : f32 to vector<32x128xf32>
    %8 = arith.maximumf %6, %7 : vector<32x128xf32>
    %9 = vector.extract_strided_slice %2 {offsets = [32, 0], sizes = [8, 128], strides = [1, 1]} : vector<40x128xf32> to vector<8x128xf32>
    %10 = arith.mulf %9, %9 : vector<8x128xf32>
    %cst_6 = arith.constant dense<0.000000e+00> : vector<128xf32>
    %11 = vector.multi_reduction <add>, %10, %cst_6 [0] : vector<8x128xf32> to vector<128xf32>
    %12 = vector.shape_cast %11 : vector<128xf32> to vector<1x128xf32>
    %13 = arith.mulf %0, %0 : vector<32x128xf32>
    %cst_7 = arith.constant dense<0.000000e+00> : vector<128xf32>
    %14 = vector.multi_reduction <add>, %13, %cst_7 [0] : vector<32x128xf32> to vector<128xf32>
    %15 = vector.shape_cast %14 : vector<128xf32> to vector<1x128xf32>
    %16 = arith.subf %12, %15 : vector<1x128xf32>
    %cst_8 = arith.constant 5.000000e-01 : f32
    %17 = vector.broadcast %cst_8 : f32 to vector<1x128xf32>
    %18 = arith.mulf %17, %16 : vector<1x128xf32>
    %c0_9 = arith.constant 0 : index
    %c0_10 = arith.constant 0 : index
    %19 = vector.load %arg4[%c0_9, %c0_10] : memref<16x32xf32, #tpu.memory_space<vmem>>, vector<16x32xf32>
    %cst_11 = arith.constant dense<0.000000e+00> : vector<16x128xf32>
    %20 = tpu.matmul %19, %8, %cst_11 {dimension_numbers = #tpu.dot_dimension_numbers<[1], [0], [0], [1], [0, 0, 1, 1], [], []>, precision = #tpu.contract_precision<fp32>} : vector<16x32xf32>, vector<32x128xf32>, vector<16x128xf32> -> vector<16x128xf32>
    %c0_12 = arith.constant 0 : index
    %c0_13 = arith.constant 0 : index
    %21 = vector.load %arg5[%c0_12, %c0_13] : memref<16x1xf32, #tpu.memory_space<vmem>>, vector<16x1xf32>
    %22 = vector.broadcast %21 : vector<16x1xf32> to vector<16x128xf32>
    %23 = arith.addf %20, %22 : vector<16x128xf32>
    %cst_14 = arith.constant 0.000000e+00 : f32
    %24 = vector.broadcast %cst_14 : f32 to vector<16x128xf32>
    %25 = arith.maximumf %23, %24 : vector<16x128xf32>
    %c0_15 = arith.constant 0 : index
    %c0_16 = arith.constant 0 : index
    %26 = vector.load %arg6[%c0_15, %c0_16] : memref<16x1xf32, #tpu.memory_space<vmem>>, vector<16x1xf32>
    %27 = vector.broadcast %26 : vector<16x1xf32> to vector<16x128xf32>
    %28 = arith.mulf %25, %27 : vector<16x128xf32>
    %cst_17 = arith.constant dense<0.000000e+00> : vector<128xf32>
    %29 = vector.multi_reduction <add>, %28, %cst_17 [0] : vector<16x128xf32> to vector<128xf32>
    %30 = vector.shape_cast %29 : vector<128xf32> to vector<1x128xf32>
    %c0_18 = arith.constant 0 : index
    %c0_19 = arith.constant 0 : index
    %31 = vector.load %arg7[%c0_18, %c0_19] : memref<1x1xf32, #tpu.memory_space<vmem>>, vector<1x1xf32>
    %32 = vector.broadcast %31 : vector<1x1xf32> to vector<1x128xf32>
    %33 = arith.addf %30, %32 : vector<1x128xf32>
    %34 = arith.addf %18, %33 : vector<1x128xf32>
    %35 = arith.negf %34 : vector<1x128xf32>
    %36 = math.exp %35 : vector<1x128xf32>
    %cst_20 = arith.constant 1.000000e+00 : f32
    %37 = vector.broadcast %cst_20 : f32 to vector<1x128xf32>
    %38 = arith.addf %37, %36 : vector<1x128xf32>
    %39 = arith.divf %37, %38 : vector<1x128xf32>
    %c0_21 = arith.constant 0 : index
    %c0_22 = arith.constant 0 : index
    %40 = vector.load %arg8[%c0_21, %c0_22] : memref<1x128xf32, #tpu.memory_space<vmem>>, vector<1x128xf32>
    tpu.vector_store %arg8[%c0_21, %c0_22], %39 {strides = array<i32>} : memref<1x128xf32, #tpu.memory_space<vmem>>, vector<1x128xf32>,
    return
  }
  func.func @transform_0(%arg0: i32) -> (i32, i32) {
    %c0_i32 = arith.constant 0 : i32
    %c0_i32_0 = arith.constant 0 : i32
    return %c0_i32, %arg0 : i32, i32
  }
  func.func @transform_1(%arg0: i32) -> (i32, i32) {
    %c0_i32 = arith.constant 0 : i32
    %c0_i32_0 = arith.constant 0 : i32
    %c0_i32_1 = arith.constant 0 : i32
    return %c0_i32, %c0_i32_0 : i32, i32
  }
  func.func @transform_2(%arg0: i32) -> (i32, i32) {
    %c0_i32 = arith.constant 0 : i32
    %c0_i32_0 = arith.constant 0 : i32
    %c0_i32_1 = arith.constant 0 : i32
    return %c0_i32, %c0_i32_0 : i32, i32
  }
  func.func @transform_3(%arg0: i32) -> (i32, i32) {
    %c0_i32 = arith.constant 0 : i32
    %c0_i32_0 = arith.constant 0 : i32
    %c0_i32_1 = arith.constant 0 : i32
    return %c0_i32, %c0_i32_0 : i32, i32
  }
  func.func @transform_4(%arg0: i32) -> (i32, i32) {
    %c0_i32 = arith.constant 0 : i32
    %c0_i32_0 = arith.constant 0 : i32
    %c0_i32_1 = arith.constant 0 : i32
    return %c0_i32, %c0_i32_0 : i32, i32
  }
  func.func @transform_5(%arg0: i32) -> (i32, i32) {
    %c0_i32 = arith.constant 0 : i32
    %c0_i32_0 = arith.constant 0 : i32
    %c0_i32_1 = arith.constant 0 : i32
    return %c0_i32, %c0_i32_0 : i32, i32
  }
  func.func @transform_6(%arg0: i32) -> (i32, i32) {
    %c0_i32 = arith.constant 0 : i32
    %c0_i32_0 = arith.constant 0 : i32
    %c0_i32_1 = arith.constant 0 : i32
    return %c0_i32, %c0_i32_0 : i32, i32
  }
  func.func @transform_7(%arg0: i32) -> (i32, i32) {
    %c0_i32 = arith.constant 0 : i32
    %c0_i32_0 = arith.constant 0 : i32
    return %c0_i32, %arg0 : i32, i32
  }
}

</mosaic_0001>

<llo_original>
// kernel: tpu_custom_call.1
$region0: #{tpu_custom_call.1}
  #allocation0 [shape = 'u32[]', space=smem, size = 0x4, offset = 0x4, fixed_abs, tag = 'smem constant byte address 0x4 - core index']
  #allocation1 [shape = 'u32[72,128]{1,0:T(1,128)}', space=vmem, size = 0x9000, scoped, tag = 'internal scratch']
  #allocation2 [shape = 'f32[1,1]{1,0:T(1,128)S(1)}', space=vmem, size = 0x200, scoped, tag = 'scoped memory for tpu_custom_call.1']
  %s0 = inlined_call_operand.vmem [shape: f32[32,256], index: 0, kind: input, shape index: {}]
  %s1 = inlined_call_operand.vmem [shape: f32[40,32], index: 1, kind: input, shape index: {}]
  %s2 = inlined_call_operand.vmem [shape: f32[32,1], index: 2, kind: input, shape index: {}]
  %s3 = inlined_call_operand.vmem [shape: f32[16,32], index: 3, kind: input, shape index: {}]
  %s4 = inlined_call_operand.vmem [shape: f32[16,1], index: 4, kind: input, shape index: {}]
  %s5 = inlined_call_operand.vmem [shape: f32[16,1], index: 5, kind: input, shape index: {}]
  %s6 = inlined_call_operand.<no memory space> [shape: f32[1,1], index: 6, kind: input, shape index: {}]
  %s7 = inlined_call_operand.hbm [shape: f32[1,256], index: 7, kind: output, shape index: {}]
  %s8 = sld [smem:[#allocation0]]
  $region99: #{tpu_custom_call.1} parent=0
    _
  %s10 = ssub.s32 1, %s8
  %s11 = scalar_select 0, %s10, %s8
  %v12 = vstv %s6
  %13 = vst [vmem:[#allocation2] sm:$0x1] %v12
  $region1: #{tpu_custom_call.1} parent=0
    #allocation3 [shape = 'u8[32768]{0}', space=vmem, size = 0x8000, scoped, tag = 'input window, operand 0']
    #allocation4 [shape = 'u8[1024]{0}', space=vmem, size = 0x400, scoped, tag = 'output window, operand 0']
    #allocation5 [shape = 's32[2]{0}', space=sflag, size = 0x8, scoped, tag = 'scoped memory for tpu_custom_call.1']
    %14 = vsyncpa [#allocation5], 0
    %s15 = scalar_lea.sflag [#allocation5], 1
    %16 = vsyncpa %s15, 0
    loop: start=0, step=1, limit=4
    $region2: #{tpu_custom_call.1} parent=1 // loop_pre_header
      _
    $region3: #{tpu_custom_call.1} parent=1 // loop_header
      %s18 = sphi 0, %s22
      %p19 = scmp.ge.s32.totalorder %s18, 4
      %s28 = sphi 0, %s30
      %s31 = sphi 0, %s28
      %s32 = sphi 0, %s31
      %s48 = sphi 0, %s32
      %s52 = sphi 0, %s52
      %s54 = sphi 0, %s52
      %s55 = sphi 0, %s54
      %s69 = sphi 0, %s55
      %s73 = sphi 0, %s73
      %s75 = sphi 0, %s73
      %s76 = sphi 0, %s75
      %s90 = sphi 0, %s76
      %s94 = sphi 0, %s94
      %s96 = sphi 0, %s94
      %s97 = sphi 0, %s96
      %s111 = sphi 0, %s97
      %s115 = sphi 0, %s115
      %s117 = sphi 0, %s115
      %s118 = sphi 0, %s117
      %s132 = sphi 0, %s118
      %s136 = sphi 0, %s136
      %s138 = sphi 0, %s136
      %s139 = sphi 0, %s138
      %s153 = sphi 0, %s139
      %s157 = sphi 0, %s157
      %s159 = sphi 0, %s157
      %s160 = sphi 0, %s159
      %s174 = sphi 0, %s160
      %s180 = sphi 0, %s182
      %s183 = sphi 0, %s180
      %s184 = sphi 0, %s183
      %s200 = sphi 0, %s184
    $region4: #{tpu_custom_call.1} parent=1 // loop_header_branch
      %21 = sbr.rel (%p19) target = $region8
    $region5: #{tpu_custom_call.1} parent=1 // loop_body
      %s23 = ssub.s32 %s18, 1
      %s24 = ssub.s32 %s18, 2
      %s25 = sadd.s32 %s18, 1
      %s26 = ssub.s32 %s18, %s25
      %p27 = scmp.eq.s32.totalorder %s26, 0
      %s29 = sadd.s32 %s28, 1
      %s30 = scalar_select %p27, %s28, %s29
      %p33 = pneg %p27
      %p34 = scmp.eq.s32.totalorder %s18, 1
      %p35 = por %p33, %p34
      %p36 = scmp.ne.s32.totalorder %s28, %s31
      %p37 = scmp.eq.s32.totalorder %s18, 0
      %p38 = por %p36, %p37
      %p39 = scmp.ne.s32.totalorder %s28, %s31
      %p40 = scmp.eq.s32.totalorder %s23, 1
      %p41 = por %p39, %p40
      %p42 = scmp.ne.s32.totalorder %s31, %s32
      %p43 = scmp.eq.s32.totalorder %s23, 0
      %p44 = por %p42, %p43
      %p45 = scmp.ne.s32.totalorder %s31, %s32
      %p46 = scmp.eq.s32.totalorder %s24, 1
      %p47 = por %p45, %p46
      %p49 = scmp.ne.s32.totalorder %s32, %s48
      %p50 = scmp.eq.s32.totalorder %s24, 0
      %p51 = por %p49, %p50
      %s53 = sadd.s32 %s52, 1
      %p56 = scmp.eq.s32.totalorder %s18, 1
      %p57 = scmp.ne.s32.totalorder %s52, %s54
      %p58 = scmp.eq.s32.totalorder %s18, 0
      %p59 = por %p57, %p58
      %p60 = scmp.ne.s32.totalorder %s52, %s54
      %p61 = scmp.eq.s32.totalorder %s23, 1
      %p62 = por %p60, %p61
      %p63 = scmp.ne.s32.totalorder %s54, %s55
      %p64 = scmp.eq.s32.totalorder %s23, 0
      %p65 = por %p63, %p64
      %p66 = scmp.ne.s32.totalorder %s54, %s55
      %p67 = scmp.eq.s32.totalorder %s24, 1
      %p68 = por %p66, %p67
      %p70 = scmp.ne.s32.totalorder %s55, %s69
      %p71 = scmp.eq.s32.totalorder %s24, 0
      %p72 = por %p70, %p71
      %s74 = sadd.s32 %s73, 1
      %p77 = scmp.eq.s32.totalorder %s18, 1
      %p78 = scmp.ne.s32.totalorder %s73, %s75
      %p79 = scmp.eq.s32.totalorder %s18, 0
      %p80 = por %p78, %p79
      %p81 = scmp.ne.s32.totalorder %s73, %s75
      %p82 = scmp.eq.s32.totalorder %s23, 1
      %p83 = por %p81, %p82
      %p84 = scmp.ne.s32.totalorder %s75, %s76
      %p85 = scmp.eq.s32.totalorder %s23, 0
      %p86 = por %p84, %p85
      %p87 = scmp.ne.s32.totalorder %s75, %s76
      %p88 = scmp.eq.s32.totalorder %s24, 1
      %p89 = por %p87, %p88
      %p91 = scmp.ne.s32.totalorder %s76, %s90
      %p92 = scmp.eq.s32.totalorder %s24, 0
      %p93 = por %p91, %p92
      %s95 = sadd.s32 %s94, 1
      %p98 = scmp.eq.s32.totalorder %s18, 1
      %p99 = scmp.ne.s32.totalorder %s94, %s96
      %p100 = scmp.eq.s32.totalorder %s18, 0
      %p101 = por %p99, %p100
      %p102 = scmp.ne.s32.totalorder %s94, %s96
      %p103 = scmp.eq.s32.totalorder %s23, 1
      %p104 = por %p102, %p103
      %p105 = scmp.ne.s32.totalorder %s96, %s97
      %p106 = scmp.eq.s32.totalorder %s23, 0
      %p107 = por %p105, %p106
      %p108 = scmp.ne.s32.totalorder %s96, %s97
      %p109 = scmp.eq.s32.totalorder %s24, 1
      %p110 = por %p108, %p109
      %p112 = scmp.ne.s32.totalorder %s97, %s111
      %p113 = scmp.eq.s32.totalorder %s24, 0
      %p114 = por %p112, %p113
      %s116 = sadd.s32 %s115, 1
      %p119 = scmp.eq.s32.totalorder %s18, 1
      %p120 = scmp.ne.s32.totalorder %s115, %s117
      %p121 = scmp.eq.s32.totalorder %s18, 0
      %p122 = por %p120, %p121
      %p123 = scmp.ne.s32.totalorder %s115, %s117
      %p124 = scmp.eq.s32.totalorder %s23, 1
      %p125 = por %p123, %p124
      %p126 = scmp.ne.s32.totalorder %s117, %s118
      %p127 = scmp.eq.s32.totalorder %s23, 0
      %p128 = por %p126, %p127
      %p129 = scmp.ne.s32.totalorder %s117, %s118
      %p130 = scmp.eq.s32.totalorder %s24, 1
      %p131 = por %p129, %p130
      %p133 = scmp.ne.s32.totalorder %s118, %s132
      %p134 = scmp.eq.s32.totalorder %s24, 0
      %p135 = por %p133, %p134
      %s137 = sadd.s32 %s136, 1
      %p140 = scmp.eq.s32.totalorder %s18, 1
      %p141 = scmp.ne.s32.totalorder %s136, %s138
      %p142 = scmp.eq.s32.totalorder %s18, 0
      %p143 = por %p141, %p142
      %p144 = scmp.ne.s32.totalorder %s136, %s138
      %p145 = scmp.eq.s32.totalorder %s23, 1
      %p146 = por %p144, %p145
      %p147 = scmp.ne.s32.totalorder %s138, %s139
      %p148 = scmp.eq.s32.totalorder %s23, 0
      %p149 = por %p147, %p148
      %p150 = scmp.ne.s32.totalorder %s138, %s139
      %p151 = scmp.eq.s32.totalorder %s24, 1
      %p152 = por %p150, %p151
      %p154 = scmp.ne.s32.totalorder %s139, %s153
      %p155 = scmp.eq.s32.totalorder %s24, 0
      %p156 = por %p154, %p155
      %s158 = sadd.s32 %s157, 1
      %p161 = scmp.eq.s32.totalorder %s18, 1
      %p162 = scmp.ne.s32.totalorder %s157, %s159
      %p163 = scmp.eq.s32.totalorder %s18, 0
      %p164 = por %p162, %p163
      %p165 = scmp.ne.s32.totalorder %s157, %s159
      %p166 = scmp.eq.s32.totalorder %s23, 1
      %p167 = por %p165, %p166
      %p168 = scmp.ne.s32.totalorder %s159, %s160
      %p169 = scmp.eq.s32.totalorder %s23, 0
      %p170 = por %p168, %p169
      %p171 = scmp.ne.s32.totalorder %s159, %s160
      %p172 = scmp.eq.s32.totalorder %s24, 1
      %p173 = por %p171, %p172
      %p175 = scmp.ne.s32.totalorder %s160, %s174
      %p176 = scmp.eq.s32.totalorder %s24, 0
      %p177 = por %p175, %p176
      %s178 = ssub.s32 %s18, %s25
      %p179 = scmp.eq.s32.totalorder %s178, 0
      %s181 = sadd.s32 %s180, 1
      %s182 = scalar_select %p179, %s180, %s181
      %p185 = pneg %p179
      %p186 = scmp.eq.s32.totalorder %s18, 1
      %p187 = por %p185, %p186
      %p188 = scmp.ne.s32.totalorder %s180, %s183
      %p189 = scmp.eq.s32.totalorder %s18, 0
      %p190 = por %p188, %p189
      %p191 = scmp.ne.s32.totalorder %s180, %s183
      %p192 = scmp.eq.s32.totalorder %s23, 1
      %p193 = por %p191, %p192
      %p194 = scmp.ne.s32.totalorder %s183, %s184
      %p195 = scmp.eq.s32.totalorder %s23, 0
      %p196 = por %p194, %p195
      %p197 = scmp.ne.s32.totalorder %s183, %s184
      %p198 = scmp.eq.s32.totalorder %s24, 1
      %p199 = por %p197, %p198
      %p201 = scmp.ne.s32.totalorder %s184, %s200
      %p202 = scmp.eq.s32.totalorder %s24, 0
      %p203 = por %p201, %p202
      %p204 = scmp.le.s32.totalorder 1, %s18
      %p205 = scmp.lt.s32.totalorder %s18, 3
      %p206 = pnand %p204, %p205
      %p207 = pneg %p206
      // Predicated region
      $region9: #{tpu_custom_call.1} parent=5 // pred_check
        _
      $region10: #{tpu_custom_call.1} parent=5 // pred_check_branch
        %209 = sbr.rel (%p206) target = $region12
      $region11: #{tpu_custom_call.1} parent=5 // pred_region
        %s210 = ssub.s32 %s18, 1
        // Predicated region
        $region13: #{tpu_custom_call.1} parent=11 // pred_check
          %p211 = pneg %p65
        $region14: #{tpu_custom_call.1} parent=11 // pred_check_branch
          %213 = sbr.rel (%p211) target = $region16
        $region15: #{tpu_custom_call.1} parent=11 // pred_region
          _
        $region16: #{tpu_custom_call.1} parent=11 // pred_fallthru
          _
        // Predicated region
        $region17: #{tpu_custom_call.1} parent=11 // pred_check
          %p214 = pneg %p86
        $region18: #{tpu_custom_call.1} parent=11 // pred_check_branch
          %216 = sbr.rel (%p214) target = $region20
        $region19: #{tpu_custom_call.1} parent=11 // pred_region
          _
        $region20: #{tpu_custom_call.1} parent=11 // pred_fallthru
          _
        // Predicated region
        $region21: #{tpu_custom_call.1} parent=11 // pred_check
          %p217 = pneg %p107
        $region22: #{tpu_custom_call.1} parent=11 // pred_check_branch
          %219 = sbr.rel (%p217) target = $region24
        $region23: #{tpu_custom_call.1} parent=11 // pred_region
          _
        $region24: #{tpu_custom_call.1} parent=11 // pred_fallthru
          _
        // Predicated region
        $region25: #{tpu_custom_call.1} parent=11 // pred_check
          %p220 = pneg %p128
        $region26: #{tpu_custom_call.1} parent=11 // pred_check_branch
          %222 = sbr.rel (%p220) target = $region28
        $region27: #{tpu_custom_call.1} parent=11 // pred_region
          _
        $region28: #{tpu_custom_call.1} parent=11 // pred_fallthru
          _
        // Predicated region
        $region29: #{tpu_custom_call.1} parent=11 // pred_check
          %p223 = pneg %p149
        $region30: #{tpu_custom_call.1} parent=11 // pred_check_branch
          %225 = sbr.rel (%p223) target = $region32
        $region31: #{tpu_custom_call.1} parent=11 // pred_region
          _
        $region32: #{tpu_custom_call.1} parent=11 // pred_fallthru
          _
        // Predicated region
        $region33: #{tpu_custom_call.1} parent=11 // pred_check
          %p226 = pneg %p170
        $region34: #{tpu_custom_call.1} parent=11 // pred_check_branch
          %228 = sbr.rel (%p226) target = $region36
        $region35: #{tpu_custom_call.1} parent=11 // pred_region
          _
        $region36: #{tpu_custom_call.1} parent=11 // pred_fallthru
          _
      $region12: #{tpu_custom_call.1} parent=5 // pred_fallthru
        _
      %p229 = scmp.lt.s32.totalorder %s18, 2
      // Predicated region
      $region37: #{tpu_custom_call.1} parent=5 // pred_check
        %p230 = pneg %p229
      $region38: #{tpu_custom_call.1} parent=5 // pred_check_branch
        %232 = sbr.rel (%p230) target = $region40
      $region39: #{tpu_custom_call.1} parent=5 // pred_region
        // Predicated region
        $region41: #{tpu_custom_call.1} parent=39 // pred_check
          %p233 = pneg %p38
        $region42: #{tpu_custom_call.1} parent=39 // pred_check_branch
          %235 = sbr.rel (%p233) target = $region44
        $region43: #{tpu_custom_call.1} parent=39 // pred_region
          %s236 = sand.u32 %s28, 1
          %s237 = sand.u32 %s28, 1
          %s238 = smul.addr %s237, 32
          %s239 = scalar_lea.vmem [#allocation3], %s238
          %s240 = smul.addr %s18, 8
          %s241 = scalar_lea.vmem %s0, %s240
          // Predicated region
          $region45: #{tpu_custom_call.1} parent=43 // pred_check
            _
          $region46: #{tpu_custom_call.1} parent=43 // pred_check_branch
            %243 = sbr.rel (0) target = $region48
          $region47: #{tpu_custom_call.1} parent=43 // pred_region
            // Predicated region
            $region49: #{tpu_custom_call.1} parent=47 // pred_check
              _
            $region50: #{tpu_custom_call.1} parent=47 // pred_check_branch
              %245 = sbr.rel (0) target = $region52
            $region51: #{tpu_custom_call.1} parent=47 // pred_region
              // Predicated region
              $region64: #{tpu_custom_call.1} parent=51 // pred_check
                _
              $region65: #{tpu_custom_call.1} parent=51 // pred_check_branch
                %267 = sbr.rel (0) target = $region67
              $region66: #{tpu_custom_call.1} parent=51 // pred_region
                loop: start=0, step=1, limit=1
                $region68: #{tpu_custom_call.1} parent=66 // loop_pre_header
                  _
                $region69: #{tpu_custom_call.1} parent=66 // loop_header
                  %s269 = sphi 0, %s273
                  %p270 = scmp.ge.s32.totalorder %s269, 1
                  %s274 = sphi %s241, %s241
                  %s275 = sphi %s239, %s239
                $region70: #{tpu_custom_call.1} parent=66 // loop_header_branch
                  %272 = sbr.rel (%p270) target = $region74
                $region71: #{tpu_custom_call.1} parent=66 // loop_body
                  %v276 = vld [vmem:[%s274] sm:$0xff]
                  %277 = vst [vmem:[%s275] sm:$0xff] %v276
                  %v278 = vld [vmem:[%s274 + $0x10] sm:$0xff]
                  %279 = vst [vmem:[%s275 + $0x8] sm:$0xff] %v278
                  %v280 = vld [vmem:[%s274 + $0x20] sm:$0xff]
                  %281 = vst [vmem:[%s275 + $0x10] sm:$0xff] %v280
                  %v282 = vld [vmem:[%s274 + $0x30] sm:$0xff]
                  %283 = vst [vmem:[%s275 + $0x18] sm:$0xff] %v282
                $region72: #{tpu_custom_call.1} parent=66 // loop_footer
                  %s273 = sadd.s32 1, %s269
                $region73: #{tpu_custom_call.1} parent=66 // loop_footer_branch
                  %268 = sbr.rel target = $region69
                $region74: #{tpu_custom_call.1} parent=66 // loop_exit
                  _
              $region67: #{tpu_custom_call.1} parent=51 // pred_fallthru
                _
              // Predicated region
              $region75: #{tpu_custom_call.1} parent=51 // pred_check
                _
              $region76: #{tpu_custom_call.1} parent=51 // pred_check_branch
                %285 = sbr.rel target = $region78
              $region77: #{tpu_custom_call.1} parent=51 // pred_region
                _
              $region78: #{tpu_custom_call.1} parent=51 // pred_fallthru
                _
            $region52: #{tpu_custom_call.1} parent=47 // pred_fallthru
              _
            // Predicated region
            $region53: #{tpu_custom_call.1} parent=47 // pred_check
              _
            $region54: #{tpu_custom_call.1} parent=47 // pred_check_branch
              %247 = sbr.rel target = $region56
            $region55: #{tpu_custom_call.1} parent=47 // pred_region
              %s249 = ssub.s32 256, 1
              loop: start=0, step=1, limit=1
              $region57: #{tpu_custom_call.1} parent=55 // loop_pre_header
                _
              $region58: #{tpu_custom_call.1} parent=55 // loop_header
                %s251 = sphi 0, %s255
                %p252 = scmp.ge.s32.totalorder %s251, 1
                %s256 = sphi %s241, %s241
                %s257 = sphi %s239, %s239
              $region59: #{tpu_custom_call.1} parent=55 // loop_header_branch
                %254 = sbr.rel (%p252) target = $region63
              $region60: #{tpu_custom_call.1} parent=55 // loop_body
                %v258 = vld [vmem:[%s256] sm:%s249]
                %259 = vst [vmem:[%s257] sm:%s249] %v258
                %v260 = vld [vmem:[%s256 + $0x10] sm:%s249]
                %261 = vst [vmem:[%s257 + $0x8] sm:%s249] %v260
                %v262 = vld [vmem:[%s256 + $0x20] sm:%s249]
                %263 = vst [vmem:[%s257 + $0x10] sm:%s249] %v262
                %v264 = vld [vmem:[%s256 + $0x30] sm:%s249]
                %265 = vst [vmem:[%s257 + $0x18] sm:%s249] %v264
              $region61: #{tpu_custom_call.1} parent=55 // loop_footer
                %s255 = sadd.s32 1, %s251
              $region62: #{tpu_custom_call.1} parent=55 // loop_footer_branch
                %250 = sbr.rel target = $region58
              $region63: #{tpu_custom_call.1} parent=55 // loop_exit
                _
            $region56: #{tpu_custom_call.1} parent=47 // pred_fallthru
              _
          $region48: #{tpu_custom_call.1} parent=43 // pred_fallthru
            _
          %286 = vnop
        $region44: #{tpu_custom_call.1} parent=39 // pred_fallthru
          _
      $region40: #{tpu_custom_call.1} parent=5 // pred_fallthru
        _
      %p287 = scmp.le.s32.totalorder 1, %s18
      %p288 = scmp.lt.s32.totalorder %s18, 3
      %p289 = pnand %p287, %p288
      %p290 = pneg %p289
      // Predicated region
      $region79: #{tpu_custom_call.1} parent=5 // pred_check
        _
      $region80: #{tpu_custom_call.1} parent=5 // pred_check_branch
        %292 = sbr.rel (%p289) target = $region82
      $region81: #{tpu_custom_call.1} parent=5 // pred_region
        %s293 = ssub.s32 %s18, 1
        %s294 = sand.u32 %s31, 1
        %s295 = sand.u32 %s31, 1
        %s296 = smul.addr %s295, 32
        %s297 = scalar_lea.vmem [#allocation3], %s296
        // Predicated region
        $region83: #{tpu_custom_call.1} parent=81 // pred_check
          %p298 = pneg %p44
        $region84: #{tpu_custom_call.1} parent=81 // pred_check_branch
          %300 = sbr.rel (%p298) target = $region86
        $region85: #{tpu_custom_call.1} parent=81 // pred_region
          _
        $region86: #{tpu_custom_call.1} parent=81 // pred_fallthru
          _
        %s301 = sand.u32 %s31, 1
        %s302 = sand.u32 %s31, 1
        %s303 = smul.addr %s302, 32
        %s304 = scalar_lea.vmem [#allocation3], %s303
        %p305 = pneg %p44
        %p306 = pneg %p41
        %p307 = pneg %p65
        %p308 = pneg %p62
        %p309 = pneg %p86
        %p310 = pneg %p83
        %p311 = pneg %p107
        %p312 = pneg %p104
        %p313 = pneg %p128
        %p314 = pneg %p125
        %p315 = pneg %p149
        %p316 = pneg %p146
        %p317 = pneg %p170
        %p318 = pneg %p167
        %p319 = pneg %p196
        %p320 = pneg %p193
        %s321 = sand.u32 %s183, 1
        %s322 = scalar_lea.sflag [#allocation5], %s321
        %s323 = sand.u32 %s183, 1
        %s324 = scalar_lea.vmem [#allocation4], %s323
        %v325 = vld [vmem:[%s297] sm:$0xff]
        %v326 = vld [vmem:[%s297 + $0x8] sm:$0xff]
        %v327 = vld [vmem:[%s297 + $0x10] sm:$0xff]
        %v328 = vld [vmem:[%s297 + $0x18] sm:$0xff]
        %v329 = vld [vmem:[%s1] sm:$0xff]
        %v330 = vld [vmem:[%s1 + $0x8] sm:$0xff]
        %v331 = vld [vmem:[%s1 + $0x10] sm:$0xff]
        %v332 = vld [vmem:[%s1 + $0x18] sm:$0xff]
        %v333 = vld [vmem:[%s1 + $0x20] sm:$0xff]
        %vm334 = vcmask 261120
        %v336 = vsel %vm334, %v329, 0
        %v339 = vsel %vm334, %v330, 0
        %v342 = vsel %vm334, %v331, 0
        %v345 = vsel %vm334, %v332, 0
        %v348 = vsel %vm334, %v333, 0
        %350 = vmatpush.msra.mxu0 0.0
        %351 = vmatpush.msra.mxu0 0.0
        %352 = vmatpush.msra.mxu0 0.0
        %353 = vmatpush.msra.mxu0 0.0
        %354 = vmatpush.msra.mxu0 0.0
        %355 = vmatpush.msra.mxu0 0.0
        %356 = vmatpush.msra.mxu0 0.0
        %357 = vmatpush.msra.mxu0 0.0
        %358 = vmatpush.msra.mxu0 0.0
        %359 = vmatpush.msra.mxu0 0.0
        %360 = vmatpush.msra.mxu0 0.0
        %361 = vmatpush.msra.mxu0 0.0
        %v362 = vand.u32 %v328, 4294901760
        %363 = vmatpush.msra.mxu0 %v362
        %v364 = vand.u32 %v327, 4294901760
        %365 = vmatpush.msra.mxu0 %v364
        %v366 = vand.u32 %v326, 4294901760
        %367 = vmatpush.msra.mxu0 %v366
        %v368 = vand.u32 %v325, 4294901760
        %369 = vmatpush.msra.mxu0 %v368
        %v370 = vand.u32 %v336, 4294901760
        %v371 = vsub.f32 %v336, %v370
        %v372 = vand.u32 %v371, 4294901760
        %v373 = vsub.f32 %v371, %v372
        %v374 = vand.u32 %v373, 4294901760
        %375 = vmatmul.f32.gmra.mxu0 %v374
        %v376 = vpop.f32.mrf.mxu0
        %v377 = vadd.f32 0.0, %v376
        %v378 = vand.u32 %v339, 4294901760
        %v379 = vsub.f32 %v339, %v378
        %v380 = vand.u32 %v379, 4294901760
        %v381 = vsub.f32 %v379, %v380
        %v382 = vand.u32 %v381, 4294901760
        %383 = vmatmul.f32.gmra.mxu0 %v382
        %v384 = vpop.f32.mrf.mxu0
        %v385 = vadd.f32 0.0, %v384
        %v386 = vand.u32 %v342, 4294901760
        %v387 = vsub.f32 %v342, %v386
        %v388 = vand.u32 %v387, 4294901760
        %v389 = vsub.f32 %v387, %v388
        %v390 = vand.u32 %v389, 4294901760
        %391 = vmatmul.f32.gmra.mxu0 %v390
        %v392 = vpop.f32.mrf.mxu0
        %v393 = vadd.f32 0.0, %v392
        %v394 = vand.u32 %v345, 4294901760
        %v395 = vsub.f32 %v345, %v394
        %v396 = vand.u32 %v395, 4294901760
        %v397 = vsub.f32 %v395, %v396
        %v398 = vand.u32 %v397, 4294901760
        %399 = vmatmul.f32.gmra.mxu0 %v398
        %v400 = vpop.f32.mrf.mxu0
        %v401 = vadd.f32 0.0, %v400
        %v402 = vand.u32 %v348, 4294901760
        %v403 = vsub.f32 %v348, %v402
        %v404 = vand.u32 %v403, 4294901760
        %v405 = vsub.f32 %v403, %v404
        %v406 = vand.u32 %v405, 4294901760
        %407 = vmatmul.f32.gmra.mxu0 %v406
        %v408 = vpop.f32.mrf.mxu0
        %v409 = vadd.f32 0.0, %v408
        %410 = vdwg.mxu0
        %411 = vmatpush.msra.mxu0 0.0
        %412 = vmatpush.msra.mxu0 0.0
        %413 = vmatpush.msra.mxu0 0.0
        %414 = vmatpush.msra.mxu0 0.0
        %415 = vmatpush.msra.mxu0 0.0
        %416 = vmatpush.msra.mxu0 0.0
        %417 = vmatpush.msra.mxu0 0.0
        %418 = vmatpush.msra.mxu0 0.0
        %419 = vmatpush.msra.mxu0 0.0
        %420 = vmatpush.msra.mxu0 0.0
        %421 = vmatpush.msra.mxu0 0.0
        %422 = vmatpush.msra.mxu0 0.0
        %v423 = vand.u32 %v328, 4294901760
        %v424 = vsub.f32 %v328, %v423
        %v425 = vand.u32 %v424, 4294901760
        %v426 = vsub.f32 %v424, %v425
        %v427 = vand.u32 %v426, 4294901760
        %428 = vmatpush.msra.mxu0 %v427
        %v429 = vand.u32 %v327, 4294901760
        %v430 = vsub.f32 %v327, %v429
        %v431 = vand.u32 %v430, 4294901760
        %v432 = vsub.f32 %v430, %v431
        %v433 = vand.u32 %v432, 4294901760
        %434 = vmatpush.msra.mxu0 %v433
        %v435 = vand.u32 %v326, 4294901760
        %v436 = vsub.f32 %v326, %v435
        %v437 = vand.u32 %v436, 4294901760
        %v438 = vsub.f32 %v436, %v437
        %v439 = vand.u32 %v438, 4294901760
        %440 = vmatpush.msra.mxu0 %v439
        %v441 = vand.u32 %v325, 4294901760
        %v442 = vsub.f32 %v325, %v441
        %v443 = vand.u32 %v442, 4294901760
        %v444 = vsub.f32 %v442, %v443
        %v445 = vand.u32 %v444, 4294901760
        %446 = vmatpush.msra.mxu0 %v445
        %v447 = vand.u32 %v336, 4294901760
        %448 = vmatmul.f32.gmra.mxu0 %v447
        %v449 = vpop.f32.mrf.mxu0
        %v450 = vadd.f32 %v377, %v449
        %v451 = vand.u32 %v339, 4294901760
        %452 = vmatmul.f32.gmra.mxu0 %v451
        %v453 = vpop.f32.mrf.mxu0
        %v454 = vadd.f32 %v385, %v453
        %v455 = vand.u32 %v342, 4294901760
        %456 = vmatmul.f32.gmra.mxu0 %v455
        %v457 = vpop.f32.mrf.mxu0
        %v458 = vadd.f32 %v393, %v457
        %v459 = vand.u32 %v345, 4294901760
        %460 = vmatmul.f32.gmra.mxu0 %v459
        %v461 = vpop.f32.mrf.mxu0
        %v462 = vadd.f32 %v401, %v461
        %v463 = vand.u32 %v348, 4294901760
        %464 = vmatmul.f32.gmra.mxu0 %v463
        %v465 = vpop.f32.mrf.mxu0
        %v466 = vadd.f32 %v409, %v465
        %467 = vdwg.mxu0
        %468 = vmatpush.msra.mxu0 0.0
        %469 = vmatpush.msra.mxu0 0.0
        %470 = vmatpush.msra.mxu0 0.0
        %471 = vmatpush.msra.mxu0 0.0
        %472 = vmatpush.msra.mxu0 0.0
        %473 = vmatpush.msra.mxu0 0.0
        %474 = vmatpush.msra.mxu0 0.0
        %475 = vmatpush.msra.mxu0 0.0
        %476 = vmatpush.msra.mxu0 0.0
        %477 = vmatpush.msra.mxu0 0.0
        %478 = vmatpush.msra.mxu0 0.0
        %479 = vmatpush.msra.mxu0 0.0
        %v480 = vand.u32 %v328, 4294901760
        %v481 = vsub.f32 %v328, %v480
        %482 = vmatpush.msra.mxu0 %v481
        %v483 = vand.u32 %v327, 4294901760
        %v484 = vsub.f32 %v327, %v483
        %485 = vmatpush.msra.mxu0 %v484
        %v486 = vand.u32 %v326, 4294901760
        %v487 = vsub.f32 %v326, %v486
        %488 = vmatpush.msra.mxu0 %v487
        %v489 = vand.u32 %v325, 4294901760
        %v490 = vsub.f32 %v325, %v489
        %491 = vmatpush.msra.mxu0 %v490
        %v492 = vand.u32 %v336, 4294901760
        %v493 = vsub.f32 %v336, %v492
        %494 = vmatmul.f32.gmra.mxu0 %v493
        %v495 = vpop.f32.mrf.mxu0
        %v496 = vadd.f32 %v450, %v495
        %v497 = vand.u32 %v339, 4294901760
        %v498 = vsub.f32 %v339, %v497
        %499 = vmatmul.f32.gmra.mxu0 %v498
        %v500 = vpop.f32.mrf.mxu0
        %v501 = vadd.f32 %v454, %v500
        %v502 = vand.u32 %v342, 4294901760
        %v503 = vsub.f32 %v342, %v502
        %504 = vmatmul.f32.gmra.mxu0 %v503
        %v505 = vpop.f32.mrf.mxu0
        %v506 = vadd.f32 %v458, %v505
        %v507 = vand.u32 %v345, 4294901760
        %v508 = vsub.f32 %v345, %v507
        %509 = vmatmul.f32.gmra.mxu0 %v508
        %v510 = vpop.f32.mrf.mxu0
        %v511 = vadd.f32 %v462, %v510
        %v512 = vand.u32 %v348, 4294901760
        %v513 = vsub.f32 %v348, %v512
        %514 = vmatmul.f32.gmra.mxu0 %v513
        %v515 = vpop.f32.mrf.mxu0
        %v516 = vadd.f32 %v466, %v515
        %517 = vdwg.mxu0
        %518 = vmatpush.msra.mxu0 0.0
        %519 = vmatpush.msra.mxu0 0.0
        %520 = vmatpush.msra.mxu0 0.0
        %521 = vmatpush.msra.mxu0 0.0
        %522 = vmatpush.msra.mxu0 0.0
        %523 = vmatpush.msra.mxu0 0.0
        %524 = vmatpush.msra.mxu0 0.0
        %525 = vmatpush.msra.mxu0 0.0
        %526 = vmatpush.msra.mxu0 0.0
        %527 = vmatpush.msra.mxu0 0.0
        %528 = vmatpush.msra.mxu0 0.0
        %529 = vmatpush.msra.mxu0 0.0
        %v530 = vand.u32 %v328, 4294901760
        %531 = vmatpush.msra.mxu0 %v530
        %v532 = vand.u32 %v327, 4294901760
        %533 = vmatpush.msra.mxu0 %v532
        %v534 = vand.u32 %v326, 4294901760
        %535 = vmatpush.msra.mxu0 %v534
        %v536 = vand.u32 %v325, 4294901760
        %537 = vmatpush.msra.mxu0 %v536
        %v538 = vand.u32 %v336, 4294901760
        %v539 = vsub.f32 %v336, %v538
        %v540 = vand.u32 %v539, 4294901760
        %541 = vmatmul.f32.gmra.mxu0 %v540
        %v542 = vpop.f32.mrf.mxu0
        %v543 = vadd.f32 %v496, %v542
        %v544 = vand.u32 %v339, 4294901760
        %v545 = vsub.f32 %v339, %v544
        %v546 = vand.u32 %v545, 4294901760
        %547 = vmatmul.f32.gmra.mxu0 %v546
        %v548 = vpop.f32.mrf.mxu0
        %v549 = vadd.f32 %v501, %v548
        %v550 = vand.u32 %v342, 4294901760
        %v551 = vsub.f32 %v342, %v550
        %v552 = vand.u32 %v551, 4294901760
        %553 = vmatmul.f32.gmra.mxu0 %v552
        %v554 = vpop.f32.mrf.mxu0
        %v555 = vadd.f32 %v506, %v554
        %v556 = vand.u32 %v345, 4294901760
        %v557 = vsub.f32 %v345, %v556
        %v558 = vand.u32 %v557, 4294901760
        %559 = vmatmul.f32.gmra.mxu0 %v558
        %v560 = vpop.f32.mrf.mxu0
        %v561 = vadd.f32 %v511, %v560
        %v562 = vand.u32 %v348, 4294901760
        %v563 = vsub.f32 %v348, %v562
        %v564 = vand.u32 %v563, 4294901760
        %565 = vmatmul.f32.gmra.mxu0 %v564
        %v566 = vpop.f32.mrf.mxu0
        %v567 = vadd.f32 %v516, %v566
        %568 = vdwg.mxu0
        %569 = vmatpush.msra.mxu0 0.0
        %570 = vmatpush.msra.mxu0 0.0
        %571 = vmatpush.msra.mxu0 0.0
        %572 = vmatpush.msra.mxu0 0.0
        %573 = vmatpush.msra.mxu0 0.0
        %574 = vmatpush.msra.mxu0 0.0
        %575 = vmatpush.msra.mxu0 0.0
        %576 = vmatpush.msra.mxu0 0.0
        %577 = vmatpush.msra.mxu0 0.0
        %578 = vmatpush.msra.mxu0 0.0
        %579 = vmatpush.msra.mxu0 0.0
        %580 = vmatpush.msra.mxu0 0.0
        %v581 = vand.u32 %v328, 4294901760
        %v582 = vsub.f32 %v328, %v581
        %v583 = vand.u32 %v582, 4294901760
        %584 = vmatpush.msra.mxu0 %v583
        %v585 = vand.u32 %v327, 4294901760
        %v586 = vsub.f32 %v327, %v585
        %v587 = vand.u32 %v586, 4294901760
        %588 = vmatpush.msra.mxu0 %v587
        %v589 = vand.u32 %v326, 4294901760
        %v590 = vsub.f32 %v326, %v589
        %v591 = vand.u32 %v590, 4294901760
        %592 = vmatpush.msra.mxu0 %v591
        %v593 = vand.u32 %v325, 4294901760
        %v594 = vsub.f32 %v325, %v593
        %v595 = vand.u32 %v594, 4294901760
        %596 = vmatpush.msra.mxu0 %v595
        %v597 = vand.u32 %v336, 4294901760
        %598 = vmatmul.f32.gmra.mxu0 %v597
        %v599 = vpop.f32.mrf.mxu0
        %v600 = vadd.f32 %v543, %v599
        %v601 = vand.u32 %v339, 4294901760
        %602 = vmatmul.f32.gmra.mxu0 %v601
        %v603 = vpop.f32.mrf.mxu0
        %v604 = vadd.f32 %v549, %v603
        %v605 = vand.u32 %v342, 4294901760
        %606 = vmatmul.f32.gmra.mxu0 %v605
        %v607 = vpop.f32.mrf.mxu0
        %v608 = vadd.f32 %v555, %v607
        %v609 = vand.u32 %v345, 4294901760
        %610 = vmatmul.f32.gmra.mxu0 %v609
        %v611 = vpop.f32.mrf.mxu0
        %v612 = vadd.f32 %v561, %v611
        %v613 = vand.u32 %v348, 4294901760
        %614 = vmatmul.f32.gmra.mxu0 %v613
        %v615 = vpop.f32.mrf.mxu0
        %v616 = vadd.f32 %v567, %v615
        %617 = vdwg.mxu0
        %618 = vmatpush.msra.mxu0 0.0
        %619 = vmatpush.msra.mxu0 0.0
        %620 = vmatpush.msra.mxu0 0.0
        %621 = vmatpush.msra.mxu0 0.0
        %622 = vmatpush.msra.mxu0 0.0
        %623 = vmatpush.msra.mxu0 0.0
        %624 = vmatpush.msra.mxu0 0.0
        %625 = vmatpush.msra.mxu0 0.0
        %626 = vmatpush.msra.mxu0 0.0
        %627 = vmatpush.msra.mxu0 0.0
        %628 = vmatpush.msra.mxu0 0.0
        %629 = vmatpush.msra.mxu0 0.0
        %v630 = vand.u32 %v328, 4294901760
        %631 = vmatpush.msra.mxu0 %v630
        %v632 = vand.u32 %v327, 4294901760
        %633 = vmatpush.msra.mxu0 %v632
        %v634 = vand.u32 %v326, 4294901760
        %635 = vmatpush.msra.mxu0 %v634
        %v636 = vand.u32 %v325, 4294901760
        %637 = vmatpush.msra.mxu0 %v636
        %v638 = vand.u32 %v336, 4294901760
        %639 = vmatmul.f32.gmra.mxu0 %v638
        %v640 = vpop.f32.mrf.mxu0
        %v641 = vadd.f32 %v600, %v640
        %v642 = vand.u32 %v339, 4294901760
        %643 = vmatmul.f32.gmra.mxu0 %v642
        %v644 = vpop.f32.mrf.mxu0
        %v645 = vadd.f32 %v604, %v644
        %v646 = vand.u32 %v342, 4294901760
        %647 = vmatmul.f32.gmra.mxu0 %v646
        %v648 = vpop.f32.mrf.mxu0
        %v649 = vadd.f32 %v608, %v648
        %v650 = vand.u32 %v345, 4294901760
        %651 = vmatmul.f32.gmra.mxu0 %v650
        %v652 = vpop.f32.mrf.mxu0
        %v653 = vadd.f32 %v612, %v652
        %v654 = vand.u32 %v348, 4294901760
        %655 = vmatmul.f32.gmra.mxu0 %v654
        %v656 = vpop.f32.mrf.mxu0
        %v657 = vadd.f32 %v616, %v656
        %658 = vdwg.mxu0
        %v659 = vld [vmem:[%s2] sm:$0xff]
        %v660 = vld [vmem:[%s2 + $0x8] sm:$0xff]
        %v661 = vld [vmem:[%s2 + $0x10] sm:$0xff]
        %v662 = vld [vmem:[%s2 + $0x18] sm:$0xff]
        %664 = vset.pattern.permute.xlu0 0
        %665 = vperm.xlu0 %664, %v659
        %v666 = vpop.permute.xlu0 %665
        %669 = vset.pattern.permute.xlu0 0
        %670 = vperm.xlu0 %669, %v660
        %v671 = vpop.permute.xlu0 %670
        %674 = vset.pattern.permute.xlu0 0
        %675 = vperm.xlu0 %674, %v661
        %v676 = vpop.permute.xlu0 %675
        %679 = vset.pattern.permute.xlu0 0
        %680 = vperm.xlu0 %679, %v662
        %v681 = vpop.permute.xlu0 %680
        %v683 = vadd.f32 %v641, %v666
        %v684 = vadd.f32 %v645, %v671
        %v685 = vadd.f32 %v649, %v676
        %v686 = vadd.f32 %v653, %v681
        %v687 = vmax.f32 %v683, 0.0
        %v688 = vmax.f32 %v684, 0.0
        %v689 = vmax.f32 %v685, 0.0
        %v690 = vmax.f32 %v686, 0.0
        %v691 = vmul.f32 %v657, %v657
        %v692 = vrot.slane %v691, 4
        %v693 = vadd.f32 %v691, %v692
        %v694 = vrot.slane %v693, 2
        %v695 = vadd.f32 %v693, %v694
        %v696 = vrot.slane %v695, 1
        %v697 = vadd.f32 %v695, %v696
        %v698 = vmul.f32 %v325, %v325
        %v699 = vmul.f32 %v326, %v326
        %v700 = vmul.f32 %v327, %v327
        %v701 = vmul.f32 %v328, %v328
        %v702 = vadd.f32 %v698, %v699
        %v703 = vadd.f32 %v702, %v700
        %v704 = vadd.f32 %v703, %v701
        %v705 = vrot.slane %v704, 4
        %v706 = vadd.f32 %v704, %v705
        %v707 = vrot.slane %v706, 2
        %v708 = vadd.f32 %v706, %v707
        %v709 = vrot.slane %v708, 1
        %v710 = vadd.f32 %v708, %v709
        %v711 = vsub.f32 %v697, %v710
        %v712 = vmul.f32 %v711, 0.5
        %v713 = vld [vmem:[%s3] sm:$0xff]
        %v714 = vld [vmem:[%s3 + $0x8] sm:$0xff]
        %v715 = vld [vmem:[%s4] sm:$0xff]
        %v716 = vld [vmem:[%s4 + $0x8] sm:$0xff]
        %718 = vset.pattern.permute.xlu0 0
        %719 = vperm.xlu0 %718, %v715
        %v720 = vpop.permute.xlu0 %719
        %723 = vset.pattern.permute.xlu0 0
        %724 = vperm.xlu0 %723, %v716
        %v725 = vpop.permute.xlu0 %724
        %v728 = vsel %vm334, %v713, 0
        %v731 = vsel %vm334, %v714, 0
        %733 = vmatpush.msra.mxu0 0.0
        %734 = vmatpush.msra.mxu0 0.0
        %735 = vmatpush.msra.mxu0 0.0
        %736 = vmatpush.msra.mxu0 0.0
        %737 = vmatpush.msra.mxu0 0.0
        %738 = vmatpush.msra.mxu0 0.0
        %739 = vmatpush.msra.mxu0 0.0
        %740 = vmatpush.msra.mxu0 0.0
        %741 = vmatpush.msra.mxu0 0.0
        %742 = vmatpush.msra.mxu0 0.0
        %743 = vmatpush.msra.mxu0 0.0
        %744 = vmatpush.msra.mxu0 0.0
        %v745 = vand.u32 %v690, 4294901760
        %746 = vmatpush.msra.mxu0 %v745
        %v747 = vand.u32 %v689, 4294901760
        %748 = vmatpush.msra.mxu0 %v747
        %v749 = vand.u32 %v688, 4294901760
        %750 = vmatpush.msra.mxu0 %v749
        %v751 = vand.u32 %v687, 4294901760
        %752 = vmatpush.msra.mxu0 %v751
        %v753 = vand.u32 %v728, 4294901760
        %v754 = vsub.f32 %v728, %v753
        %v755 = vand.u32 %v754, 4294901760
        %v756 = vsub.f32 %v754, %v755
        %v757 = vand.u32 %v756, 4294901760
        %758 = vmatmul.f32.gmra.mxu0 %v757
        %v759 = vpop.f32.mrf.mxu0
        %v760 = vadd.f32 %v720, %v759
        %v761 = vand.u32 %v731, 4294901760
        %v762 = vsub.f32 %v731, %v761
        %v763 = vand.u32 %v762, 4294901760
        %v764 = vsub.f32 %v762, %v763
        %v765 = vand.u32 %v764, 4294901760
        %766 = vmatmul.f32.gmra.mxu0 %v765
        %v767 = vpop.f32.mrf.mxu0
        %v768 = vadd.f32 %v725, %v767
        %769 = vdwg.mxu0
        %770 = vmatpush.msra.mxu0 0.0
        %771 = vmatpush.msra.mxu0 0.0
        %772 = vmatpush.msra.mxu0 0.0
        %773 = vmatpush.msra.mxu0 0.0
        %774 = vmatpush.msra.mxu0 0.0
        %775 = vmatpush.msra.mxu0 0.0
        %776 = vmatpush.msra.mxu0 0.0
        %777 = vmatpush.msra.mxu0 0.0
        %778 = vmatpush.msra.mxu0 0.0
        %779 = vmatpush.msra.mxu0 0.0
        %780 = vmatpush.msra.mxu0 0.0
        %781 = vmatpush.msra.mxu0 0.0
        %v782 = vand.u32 %v690, 4294901760
        %v783 = vsub.f32 %v690, %v782
        %v784 = vand.u32 %v783, 4294901760
        %v785 = vsub.f32 %v783, %v784
        %v786 = vand.u32 %v785, 4294901760
        %787 = vmatpush.msra.mxu0 %v786
        %v788 = vand.u32 %v689, 4294901760
        %v789 = vsub.f32 %v689, %v788
        %v790 = vand.u32 %v789, 4294901760
        %v791 = vsub.f32 %v789, %v790
        %v792 = vand.u32 %v791, 4294901760
        %793 = vmatpush.msra.mxu0 %v792
        %v794 = vand.u32 %v688, 4294901760
        %v795 = vsub.f32 %v688, %v794
        %v796 = vand.u32 %v795, 4294901760
        %v797 = vsub.f32 %v795, %v796
        %v798 = vand.u32 %v797, 4294901760
        %799 = vmatpush.msra.mxu0 %v798
        %v800 = vand.u32 %v687, 4294901760
        %v801 = vsub.f32 %v687, %v800
        %v802 = vand.u32 %v801, 4294901760
        %v803 = vsub.f32 %v801, %v802
        %v804 = vand.u32 %v803, 4294901760
        %805 = vmatpush.msra.mxu0 %v804
        %v806 = vand.u32 %v728, 4294901760
        %807 = vmatmul.f32.gmra.mxu0 %v806
        %v808 = vpop.f32.mrf.mxu0
        %v809 = vadd.f32 %v760, %v808
        %v810 = vand.u32 %v731, 4294901760
        %811 = vmatmul.f32.gmra.mxu0 %v810
        %v812 = vpop.f32.mrf.mxu0
        %v813 = vadd.f32 %v768, %v812
        %814 = vdwg.mxu0
        %815 = vmatpush.msra.mxu0 0.0
        %816 = vmatpush.msra.mxu0 0.0
        %817 = vmatpush.msra.mxu0 0.0
        %818 = vmatpush.msra.mxu0 0.0
        %819 = vmatpush.msra.mxu0 0.0
        %820 = vmatpush.msra.mxu0 0.0
        %821 = vmatpush.msra.mxu0 0.0
        %822 = vmatpush.msra.mxu0 0.0
        %823 = vmatpush.msra.mxu0 0.0
        %824 = vmatpush.msra.mxu0 0.0
        %825 = vmatpush.msra.mxu0 0.0
        %826 = vmatpush.msra.mxu0 0.0
        %v827 = vand.u32 %v690, 4294901760
        %v828 = vsub.f32 %v690, %v827
        %829 = vmatpush.msra.mxu0 %v828
        %v830 = vand.u32 %v689, 4294901760
        %v831 = vsub.f32 %v689, %v830
        %832 = vmatpush.msra.mxu0 %v831
        %v833 = vand.u32 %v688, 4294901760
        %v834 = vsub.f32 %v688, %v833
        %835 = vmatpush.msra.mxu0 %v834
        %v836 = vand.u32 %v687, 4294901760
        %v837 = vsub.f32 %v687, %v836
        %838 = vmatpush.msra.mxu0 %v837
        %v839 = vand.u32 %v728, 4294901760
        %v840 = vsub.f32 %v728, %v839
        %841 = vmatmul.f32.gmra.mxu0 %v840
        %v842 = vpop.f32.mrf.mxu0
        %v843 = vadd.f32 %v809, %v842
        %v844 = vand.u32 %v731, 4294901760
        %v845 = vsub.f32 %v731, %v844
        %846 = vmatmul.f32.gmra.mxu0 %v845
        %v847 = vpop.f32.mrf.mxu0
        %v848 = vadd.f32 %v813, %v847
        %849 = vdwg.mxu0
        %850 = vmatpush.msra.mxu0 0.0
        %851 = vmatpush.msra.mxu0 0.0
        %852 = vmatpush.msra.mxu0 0.0
        %853 = vmatpush.msra.mxu0 0.0
        %854 = vmatpush.msra.mxu0 0.0
        %855 = vmatpush.msra.mxu0 0.0
        %856 = vmatpush.msra.mxu0 0.0
        %857 = vmatpush.msra.mxu0 0.0
        %858 = vmatpush.msra.mxu0 0.0
        %859 = vmatpush.msra.mxu0 0.0
        %860 = vmatpush.msra.mxu0 0.0
        %861 = vmatpush.msra.mxu0 0.0
        %v862 = vand.u32 %v690, 4294901760
        %863 = vmatpush.msra.mxu0 %v862
        %v864 = vand.u32 %v689, 4294901760
        %865 = vmatpush.msra.mxu0 %v864
        %v866 = vand.u32 %v688, 4294901760
        %867 = vmatpush.msra.mxu0 %v866
        %v868 = vand.u32 %v687, 4294901760
        %869 = vmatpush.msra.mxu0 %v868
        %v870 = vand.u32 %v728, 4294901760
        %v871 = vsub.f32 %v728, %v870
        %v872 = vand.u32 %v871, 4294901760
        %873 = vmatmul.f32.gmra.mxu0 %v872
        %v874 = vpop.f32.mrf.mxu0
        %v875 = vadd.f32 %v843, %v874
        %v876 = vand.u32 %v731, 4294901760
        %v877 = vsub.f32 %v731, %v876
        %v878 = vand.u32 %v877, 4294901760
        %879 = vmatmul.f32.gmra.mxu0 %v878
        %v880 = vpop.f32.mrf.mxu0
        %v881 = vadd.f32 %v848, %v880
        %882 = vdwg.mxu0
        %883 = vmatpush.msra.mxu0 0.0
        %884 = vmatpush.msra.mxu0 0.0
        %885 = vmatpush.msra.mxu0 0.0
        %886 = vmatpush.msra.mxu0 0.0
        %887 = vmatpush.msra.mxu0 0.0
        %888 = vmatpush.msra.mxu0 0.0
        %889 = vmatpush.msra.mxu0 0.0
        %890 = vmatpush.msra.mxu0 0.0
        %891 = vmatpush.msra.mxu0 0.0
        %892 = vmatpush.msra.mxu0 0.0
        %893 = vmatpush.msra.mxu0 0.0
        %894 = vmatpush.msra.mxu0 0.0
        %v895 = vand.u32 %v690, 4294901760
        %v896 = vsub.f32 %v690, %v895
        %v897 = vand.u32 %v896, 4294901760
        %898 = vmatpush.msra.mxu0 %v897
        %v899 = vand.u32 %v689, 4294901760
        %v900 = vsub.f32 %v689, %v899
        %v901 = vand.u32 %v900, 4294901760
        %902 = vmatpush.msra.mxu0 %v901
        %v903 = vand.u32 %v688, 4294901760
        %v904 = vsub.f32 %v688, %v903
        %v905 = vand.u32 %v904, 4294901760
        %906 = vmatpush.msra.mxu0 %v905
        %v907 = vand.u32 %v687, 4294901760
        %v908 = vsub.f32 %v687, %v907
        %v909 = vand.u32 %v908, 4294901760
        %910 = vmatpush.msra.mxu0 %v909
        %v911 = vand.u32 %v728, 4294901760
        %912 = vmatmul.f32.gmra.mxu0 %v911
        %v913 = vpop.f32.mrf.mxu0
        %v914 = vadd.f32 %v875, %v913
        %v915 = vand.u32 %v731, 4294901760
        %916 = vmatmul.f32.gmra.mxu0 %v915
        %v917 = vpop.f32.mrf.mxu0
        %v918 = vadd.f32 %v881, %v917
        %919 = vdwg.mxu0
        %920 = vmatpush.msra.mxu0 0.0
        %921 = vmatpush.msra.mxu0 0.0
        %922 = vmatpush.msra.mxu0 0.0
        %923 = vmatpush.msra.mxu0 0.0
        %924 = vmatpush.msra.mxu0 0.0
        %925 = vmatpush.msra.mxu0 0.0
        %926 = vmatpush.msra.mxu0 0.0
        %927 = vmatpush.msra.mxu0 0.0
        %928 = vmatpush.msra.mxu0 0.0
        %929 = vmatpush.msra.mxu0 0.0
        %930 = vmatpush.msra.mxu0 0.0
        %931 = vmatpush.msra.mxu0 0.0
        %v932 = vand.u32 %v690, 4294901760
        %933 = vmatpush.msra.mxu0 %v932
        %v934 = vand.u32 %v689, 4294901760
        %935 = vmatpush.msra.mxu0 %v934
        %v936 = vand.u32 %v688, 4294901760
        %937 = vmatpush.msra.mxu0 %v936
        %v938 = vand.u32 %v687, 4294901760
        %939 = vmatpush.msra.mxu0 %v938
        %v940 = vand.u32 %v728, 4294901760
        %941 = vmatmul.f32.gmra.mxu0 %v940
        %v942 = vpop.f32.mrf.mxu0
        %v943 = vadd.f32 %v914, %v942
        %v944 = vand.u32 %v731, 4294901760
        %945 = vmatmul.f32.gmra.mxu0 %v944
        %v946 = vpop.f32.mrf.mxu0
        %v947 = vadd.f32 %v918, %v946
        %948 = vdwg.mxu0
        %v949 = vmax.f32 %v943, 0.0
        %v950 = vmax.f32 %v947, 0.0
        %v951 = vld [vmem:[%s5] sm:$0xff]
        %v952 = vld [vmem:[%s5 + $0x8] sm:$0xff]
        %954 = vset.pattern.permute.xlu0 0
        %955 = vperm.xlu0 %954, %v951
        %v956 = vpop.permute.xlu0 %955
        %959 = vset.pattern.permute.xlu0 0
        %960 = vperm.xlu0 %959, %v952
        %v961 = vpop.permute.xlu0 %960
        %v963 = vmul.f32 %v949, %v956
        %v964 = vmul.f32 %v950, %v961
        %v965 = vadd.f32 %v963, %v964
        %v966 = vrot.slane %v965, 4
        %v967 = vadd.f32 %v965, %v966
        %v968 = vrot.slane %v967, 2
        %v969 = vadd.f32 %v967, %v968
        %v970 = vrot.slane %v969, 1
        %v971 = vadd.f32 %v969, %v970
        %v972 = vld [vmem:[#allocation2] sm:$0x1]
        %974 = vset.pattern.permute.xlu0 0
        %975 = vperm.xlu0 %974, %v972
        %v976 = vpop.permute.xlu0 %975
        %v978 = vperm.slane %v976, 0
        %v979 = vadd.f32 %v971, %v978
        %v980 = vadd.f32 %v712, %v979
        %v981 = vxor.u32 %v980, 2147483648
        %v982 = vmul.f32 %v981, 1.442695
        %v983 = vpow.pop %v982
        %v984 = vadd.f32 %v983, 1.0
        %v985 = vrcp.pop %v984
        %v986 = vmul.f32 %v984, %v985
        %v987 = vsub.f32 1.0, %v986
        %v988 = vmul.f32 %v985, %v987
        %v989 = vadd.f32 %v985, %v988
        %vm990 = vweird.f32 %v984
        %vm991 = vweird.f32 %v985
        %vm992 = vmor %vm990, %vm991
        %v993 = vsel %vm992, %v985, %v989
        %v994 = vand.u32 2147483647, %v984
        %vm995 = vcmp.eq.f32.partialorder %v994, 8.507059e+37
        %v996 = vand.u32 %v984, 2147483648
        %v997 = vor.u32 1.1754944e-38, %v996
        %v998 = vsel %vm995, %v997, %v993
        %v999 = vmul.f32 1.0, %v998
        %1000 = vst [vmem:[%s324] sm:$0x1] %v999
        %s1001 = sand.u32 %s183, 1
        %s1002 = scalar_lea.sflag [#allocation5], %s1001
        %s1003 = sand.u32 %s183, 1
        %s1004 = scalar_lea.vmem [#allocation4], %s1003
        // Predicated region
        $region87: #{tpu_custom_call.1} parent=81 // pred_check
          %p1005 = pneg %p193
        $region88: #{tpu_custom_call.1} parent=81 // pred_check_branch
          %1007 = sbr.rel (%p1005) target = $region90
        $region89: #{tpu_custom_call.1} parent=81 // pred_region
          %1009 = vsyncadd %s1002, 0
          %s1010 = scalar_lea.hbm %s7, %s23
          %s1012 = sshll.u32 %s1004, 4
          %s1013 = int_to_ptr.vmem [resolvable:$true] %s1012
          %s1014 = sshll.u32 %s1010, 4
          %s1015 = int_to_ptr.hbm [resolvable:$true] %s1014
          %1017 = dma.vmem_to_hbm [thread:$0]  %s1013, 16, %s1015, %s1002
        $region90: #{tpu_custom_call.1} parent=81 // pred_fallthru
          _
      $region82: #{tpu_custom_call.1} parent=5 // pred_fallthru
        _
      %p1018 = scmp.le.s32.totalorder 2, %s18
      // Predicated region
      $region91: #{tpu_custom_call.1} parent=5 // pred_check
        %p1019 = pneg %p1018
      $region92: #{tpu_custom_call.1} parent=5 // pred_check_branch
        %1021 = sbr.rel (%p1019) target = $region94
      $region93: #{tpu_custom_call.1} parent=5 // pred_region
        %s1022 = ssub.s32 %s18, 2
        // Predicated region
        $region95: #{tpu_custom_call.1} parent=93 // pred_check
          %p1023 = pneg %p199
        $region96: #{tpu_custom_call.1} parent=93 // pred_check_branch
          %1025 = sbr.rel (%p1023) target = $region98
        $region97: #{tpu_custom_call.1} parent=93 // pred_region
          %s1026 = sand.u32 %s184, 1
          %s1027 = scalar_lea.sflag [#allocation5], %s1026
          %s1028 = sand.u32 %s184, 1
          %s1029 = scalar_lea.vmem [#allocation4], %s1028
          %1031 = dma.done %s1027, 16
        $region98: #{tpu_custom_call.1} parent=93 // pred_fallthru
          _
      $region94: #{tpu_custom_call.1} parent=5 // pred_fallthru
        _
    $region6: #{tpu_custom_call.1} parent=1 // loop_footer
      %s22 = sadd.s32 1, %s18
    $region7: #{tpu_custom_call.1} parent=1 // loop_footer_branch
      %17 = sbr.rel target = $region3
    $region8: #{tpu_custom_call.1} parent=1 // loop_exit
      _
    %1032 = vsyncpa [#allocation5], 1
    %s1033 = scalar_lea.sflag [#allocation5], 1
    %1034 = vsyncpa %s1033, 1

</llo_original>
